<compile_context>
chip_gen: v7x
topology: tpu7x:2x2x1
jax: 0.10.0
libtpu: 0.0.40
codegen_flags: <defaults>
</compile_context>

<pallas_src>
import numpy as np
import jax
import jax.numpy as jnp
from jax import lax
from jax.experimental import pallas as pl
from jax.experimental.pallas import tpu as pltpu


# ----------------------------------------------------------------------------- 
# Kernel
# -----------------------------------------------------------------------------
def _make_cutouts_kernel(px_ref, wxt_ref, wy_ref, sy_ref, sx_ref, out_ref):
    """One grid step = (one block of PB image planes) x (one block of CB cutouts).

    px_ref  : (PB*Hp, W)      image planes, pre-flattened/padded in the wrapper
    wxt_ref : (W, CB*cs)      0/1 column (W-axis) bin indicators, image dtype
    wy_ref  : (CB*cs, Hp)     0/1 row (H-axis) bin indicators, stage-2 dtype
    sy_ref  : (CB*cs, 1)      f32 1/count_y
    sx_ref  : (CB, PB*cs)     f32 1/count_x, pre-tiled over the PB planes
    out_ref : (CB*cs, PB*cs)  pooled result, row = cb*cs + y, col = p*cs + x
    """
    rows, _ = px_ref.shape
    CBcs, Hp = wy_ref.shape
    CB = sx_ref.shape[0]
    cs = CBcs // CB
    PB = rows // Hp
    s2_dtype = wy_ref.dtype

    # Stage 1: pool along W for all CB cutouts with one lane-dense MXU matmul
    # (M = PB*Hp, K = W, N = CB*cs).  The big block needs no reshape here.
    t = jnp.dot(px_ref[...], wxt_ref[...], preferred_element_type=jnp.float32)

    # Regroup the (small, lane-dense) intermediate so Hp becomes the stage-2
    # contraction axis.  The (PB*Hp -> PB, Hp) split is layout-free because Hp
    # is a multiple of the sublane pack; the transpose is one XLU pass over
    # lane-dense data.  For bf16 inputs stage 2 runs in bf16.
    t = t.astype(s2_dtype).reshape(PB, Hp, CBcs)
    t = jnp.transpose(t, (0, 2, 1))                          # (PB, CB*cs, Hp)

    # Stage 2: pool along H — one small matmul per cutout in the block
    # (M = cs, K = Hp, N = PB*cs lane-dense), apply the exact f32 1/(cy*cx)
    # scale, and store a lane-dense row-slice of the output tile.
    for cb in range(CB):
        u = t[:, cb * cs:(cb + 1) * cs, :].reshape(PB * cs, Hp)    # (PB*cs, Hp)
        wy = wy_ref[cb * cs:(cb + 1) * cs, :]                      # (cs, Hp)
        r = lax.dot_general(wy, u, (((1,), (1,)), ((), ())),
                            preferred_element_type=jnp.float32)    # (cs, PB*cs)
        r = r * sy_ref[cb * cs:(cb + 1) * cs, :] * sx_ref[cb:cb + 1, :]
        out_ref[cb * cs:(cb + 1) * cs, :] = r.astype(out_ref.dtype)


# ----------------------------------------------------------------------------- 
# Host-side helpers
# -----------------------------------------------------------------------------
def _round_up(x, m):
    return -(-int(x) // int(m)) * int(m)


def _pool_bins(sizes, cut_size):
    """Exact integer bin math matching F.adaptive_avg_pool2d."""
    i = jnp.arange(cut_size, dtype=jnp.int32)[None, :]
    sz = sizes.astype(jnp.int32)[:, None]
    start = (i * sz) // cut_size
    end = ((i + 1) * sz + cut_size - 1) // cut_size          # ceil((i+1)*sz/cs)
    return start, end                                        # (n, cs) each


def _bin_indicator(start, end, offsets, dim):
    """(n, cs, dim) 0/1 mask: position p is inside bin i of the crop."""
    p = jnp.arange(dim, dtype=jnp.int32)[None, None, :]
    s = (start + offsets.astype(jnp.int32)[:, None])[:, :, None]
    e = (end + offsets.astype(jnp.int32)[:, None])[:, :, None]
    return ((p >= s) & (p < e)).astype(jnp.float32)


def _vmem_capacity_bytes():
    try:
        return int(pltpu.get_tpu_info().vmem_capacity_bytes)
    except Exception:
        return 64 << 20   # conservative default = v7x per-TensorCore VMEM


def _working_set_bytes(pb, Hp, W, CB, cs, itemsize, s2_itemsize):
    """Padded-tile VMEM footprint of one grid step (incl. double buffering)."""
    lane, sub = 128, 8
    CBcs = CB * cs
    px_blk = 2 * pb * Hp * _round_up(W, lane) * itemsize
    wx_blk = 2 * _round_up(W, sub) * _round_up(CBcs, lane) * itemsize
    wy_blk = 2 * _round_up(CBcs, sub) * _round_up(Hp, lane) * s2_itemsize
    sy_blk = 2 * _round_up(CBcs, sub) * lane * 4
    sx_blk = 2 * _round_up(CB, sub) * _round_up(pb * cs, lane) * 4
    out_blk = 2 * _round_up(CBcs, sub) * _round_up(pb * cs, lane) * itemsize
    t_f32 = pb * Hp * _round_up(CBcs, lane) * 4                       # stage-1 acc
    t_s2 = pb * Hp * _round_up(CBcs, lane) * s2_itemsize              # cast copy
    t_tr = pb * _round_up(CBcs, sub) * _round_up(Hp, lane) * s2_itemsize
    u_r = 2 * (_round_up(pb * cs, sub) * _round_up(Hp, lane) * s2_itemsize
               + _round_up(cs, sub) * _round_up(pb * cs, lane) * 4)
    return (px_blk + wx_blk + wy_blk + sy_blk + sx_blk + out_blk
            + t_f32 + t_s2 + t_tr + u_r + (2 << 20))


def _pick_plane_block(planes, Hp, W, CB, cs, itemsize, s2_itemsize, budget):
    # Prefer >= 2 plane blocks (when there are enough planes) so a megacore
    # partitioner shards the plane axis — sharding the cutout axis instead
    # would make both cores DMA the same image block.
    pb_cap = planes if planes < 16 else -(-planes // 2)
    pb = 1
    for cand in range(pb_cap, 0, -1):
        if _working_set_bytes(cand, Hp, W, CB, cs, itemsize, s2_itemsize) <= budget:
            pb = cand
            break
    # Re-balance so the plane padding for the chosen block count is minimal.
    g = -(-planes // pb)
    pb = -(-planes // g)
    return pb, g


# ----------------------------------------------------------------------------- 
# Wrapper
# -----------------------------------------------------------------------------
def make_cutouts_pallas(pixel_values, sizes, offy, offx, cut_size):
    """Crop + adaptive_avg_pool2d for every cutout, concatenated cutout-major.

    pixel_values: (B, C, H, W); sizes/offy/offx: (num_cutouts,) int32.
    Returns (num_cutouts * B, C, cut_size, cut_size).
    """
    B, C, H, W = map(int, pixel_values.shape)
    n = int(sizes.shape[0])
    cs = int(cut_size)
    dtype = pixel_values.dtype
    itemsize = int(np.dtype(dtype).itemsize)

    # Stage-2 dtype: bf16 for bf16 inputs (native MXU), else f32.  The 1/count
    # scales always stay in f32, so pool weights are never rounded to bf16.
    s2_dtype = jnp.bfloat16 if dtype == jnp.bfloat16 else jnp.float32
    s2_itemsize = int(np.dtype(s2_dtype).itemsize)

    # --- cutout batching: CB cutouts per grid step so stage-1 N ~ 256 lanes ---
    cb_cap = max(1, 256 // cs)
    nb = -(-n // min(n, cb_cap))              # number of cutout blocks
    CB = -(-n // nb)                          # re-balanced block size
    n_pad = nb * CB

    # --- geometry / padding (all wrapper-side, plain XLA) ---
    sub_pack = max(8, 32 // itemsize)         # 8 for f32, 16 for bf16
    Hp = _round_up(H, sub_pack)
    planes = B * C

    # --- VMEM budget (whole working set; ~80% of physical VMEM as the cap) ---
    vmem_total = _vmem_capacity_bytes()
    vmem_cap = max(min(int(vmem_total * 0.80), vmem_total - (12 << 20)), 32 << 20)
    budget = max(vmem_cap - (8 << 20), 16 << 20)
    PB, G = _pick_plane_block(planes, Hp, W, CB, cs, itemsize, s2_itemsize, budget)
    planes_pad = PB * G
    ws = _working_set_bytes(PB, Hp, W, CB, cs, itemsize, s2_itemsize)
    vmem_limit = int(min(max(ws + (16 << 20), 32 << 20), vmem_cap))
    if vmem_limit < ws + (4 << 20):           # degenerate: even PB=1 exceeds cap
        vmem_limit = int(min(vmem_total - (4 << 20), ws + (8 << 20)))

    # --- image prep: (B,C,H,W) -> zero-padded, pre-flattened (planes_pad*Hp, W) ---
    px = pixel_values.reshape(planes, H, W)
    px = jnp.pad(px, ((0, planes_pad - planes), (0, Hp - H), (0, 0)))
    px2 = px.reshape(planes_pad * Hp, W)

    # --- per-cutout pooling weights (0/1 indicators) and exact f32 scales ---
    sizes_p = jnp.pad(sizes.astype(jnp.int32), (0, n_pad - n), constant_values=1)
    offy_p = jnp.pad(offy.astype(jnp.int32), (0, n_pad - n))
    offx_p = jnp.pad(offx.astype(jnp.int32), (0, n_pad - n))

    bs, be = _pool_bins(sizes_p, cs)                          # (n_pad, cs)
    ind_y = _bin_indicator(bs, be, offy_p, Hp)                # (n_pad, cs, Hp)
    ind_x = _bin_indicator(bs, be, offx_p, W)                 # (n_pad, cs, W)
    inv_cnt = 1.0 / (be - bs).astype(jnp.float32)             # (n_pad, cs)

    wxt = jnp.transpose(ind_x.reshape(nb, CB, cs, W), (0, 3, 1, 2))
    wxt = wxt.reshape(nb, W, CB * cs).astype(dtype)           # (nb, W, CB*cs)
    wy = ind_y.reshape(nb, CB * cs, Hp).astype(s2_dtype)      # (nb, CB*cs, Hp)
    sy = inv_cnt.reshape(nb, CB * cs, 1)                      # (nb, CB*cs, 1)
    sx = jnp.tile(inv_cnt, (1, PB)).reshape(nb, CB, PB * cs)  # (nb, CB, PB*cs)

    flops = (2 * planes_pad * Hp * W * n_pad * cs
             + 2 * planes_pad * n_pad * cs * cs * Hp)
    bytes_accessed = (planes_pad * Hp * W * itemsize
                      + G * (wxt.size * itemsize + wy.size * s2_itemsize
                             + (sy.size + sx.size) * 4)
                      + nb * G * CB * cs * PB * cs * itemsize)

    out = pl.pallas_call(
        _make_cutouts_kernel,
        out_shape=jax.ShapeDtypeStruct((nb, G, CB * cs, PB * cs), dtype),
        grid_spec=pltpu.PrefetchScalarGridSpec(
            num_scalar_prefetch=0,
            # Plane blocks OUTER: the big image block index is constant across
            # the inner cutout-block loop, so it is DMA'd once per plane block
            # and reused for every cutout block.
            grid=(G, nb),
            in_specs=[
                # (pl.Buffered(1) here would save VMEM on v7x when nb >= 2;
                #  kept at the default double-buffering for robustness.)
                pl.BlockSpec((PB * Hp, W), lambda g, j: (g, 0)),
                pl.BlockSpec((None, W, CB * cs), lambda g, j: (j, 0, 0)),
                pl.BlockSpec((None, CB * cs, Hp), lambda g, j: (j, 0, 0)),
                pl.BlockSpec((None, CB * cs, 1), lambda g, j: (j, 0, 0)),
                pl.BlockSpec((None, CB, PB * cs), lambda g, j: (j, 0, 0)),
            ],
            out_specs=pl.BlockSpec((None, None, CB * cs, PB * cs),
                                   lambda g, j: (j, g, 0, 0)),
        ),
        compiler_params=pltpu.CompilerParams(
            dimension_semantics=("parallel", "parallel"),
            vmem_limit_bytes=vmem_limit,
        ),
        cost_estimate=pl.CostEstimate(flops=int(flops), transcendentals=0,
                                      bytes_accessed=int(bytes_accessed)),
    )(px2, wxt, wy, sy, sx)

    # Layout plumbing back to torch.cat semantics (plain XLA, outside kernel).
    out = out.reshape(nb, G, CB, cs, PB, cs)
    out = jnp.transpose(out, (0, 2, 1, 4, 3, 5))              # (nb, CB, G, PB, y, x)
    out = out.reshape(n_pad, planes_pad, cs, cs)[:n, :planes]
    out = out.reshape(n, B, C, cs, cs)
    return out.reshape(n * B, C, cs, cs)


# ----------------------------------------------------------------------------- 
# Pure NumPy reference (crop + F.adaptive_avg_pool2d + cat)
# -----------------------------------------------------------------------------
def _ref_make_cutouts(px, sizes, offy, offx, cs):
    outs = []
    for sz, oy, ox in zip(sizes, offy, offx):
        sz, oy, ox = int(sz), int(oy), int(ox)
        crop = px[:, :, oy:oy + sz, ox:ox + sz]
        B, C = crop.shape[:2]
        out = np.zeros((B, C, cs, cs), np.float32)
        for i in range(cs):
            y0 = (i * sz) // cs
            y1 = -((-(i + 1) * sz) // cs)
            for j in range(cs):
                x0 = (j * sz) // cs
                x1 = -((-(j + 1) * sz) // cs)
                out[:, :, i, j] = crop[:, :, y0:y1, x0:x1].mean(axis=(2, 3))
        outs.append(out)
    return np.concatenate(outs, axis=0)


if __name__ == "__main__":
    # Small shapes consistent with the module's forward.
    B, C, H, W = 2, 4, 16, 16
    cut_size = 8
    cut_power = 1.0
    num_cutouts = 3

    key = jax.random.PRNGKey(0)
    k_px, k_u, k_off = jax.random.split(key, 3)

    pixel_values = jax.random.normal(k_px, (B, C, H, W), dtype=jnp.float32)

    # TODO(synk): torch's stateful RNG (torch.rand / torch.randint in forward)
    # has no in-kernel equivalent; crop sizes/offsets are drawn host-side and
    # passed to the kernel as inputs.
    max_size = min(H, W)
    min_size = min(H, W, cut_size)
    u = np.asarray(jax.random.uniform(k_u, (num_cutouts,), dtype=jnp.float32))
    sizes_np = np.floor(u ** cut_power * (max_size - min_size) + min_size).astype(np.int32)

    offy_np = np.zeros((num_cutouts,), np.int32)
    offx_np = np.zeros((num_cutouts,), np.int32)
    for idx in range(num_cutouts):
        ky, kx = jax.random.split(jax.random.fold_in(k_off, idx))
        offy_np[idx] = int(jax.random.randint(ky, (), 0, H - int(sizes_np[idx]) + 1))
        offx_np[idx] = int(jax.random.randint(kx, (), 0, W - int(sizes_np[idx]) + 1))

    sizes = jnp.asarray(sizes_np, jnp.int32)
    offy = jnp.asarray(offy_np, jnp.int32)
    offx = jnp.asarray(offx_np, jnp.int32)

    out = make_cutouts_pallas(pixel_values, sizes, offy, offx, cut_size)
    out = jax.block_until_ready(out)

    ref = _ref_make_cutouts(np.asarray(pixel_values), sizes_np, offy_np, offx_np, cut_size)
    np.testing.assert_allclose(np.asarray(out), ref, rtol=1e-5, atol=1e-5)

    print("KERNEL_OK")
</pallas_src>

<mosaic_0001>
module attributes {stable_mosaic.version = 11 : i64} {
  func.func @_make_cutouts_kernel(%arg0: i32, %arg1: i32, %arg2: memref<128x16xf32, #tpu.memory_space<vmem>>, %arg3: memref<1x16x24xf32, #tpu.memory_space<vmem>>, %arg4: memref<1x24x16xf32, #tpu.memory_space<vmem>>, %arg5: memref<1x24x1xf32, #tpu.memory_space<vmem>>, %arg6: memref<1x3x64xf32, #tpu.memory_space<vmem>>, %arg7: memref<1x1x24x64xf32, #tpu.memory_space<vmem>>) attributes {dimension_semantics = [#tpu.dimension_semantics<parallel>, #tpu.dimension_semantics<parallel>], iteration_bounds = array<i64: 1, 1>, scalar_prefetch = 0 : i64, scratch_operands = 0 : i64, tpu.core_type = #tpu.core_type<tc>, window_params = [{transform_indices = @transform_0, window_bounds = array<i64: 128, 16>}, {transform_indices = @transform_1, window_bounds = array<i64: 1, 16, 24>}, {transform_indices = @transform_2, window_bounds = array<i64: 1, 24, 16>}, {transform_indices = @transform_3, window_bounds = array<i64: 1, 24, 1>}, {transform_indices = @transform_4, window_bounds = array<i64: 1, 3, 64>}, {transform_indices = @transform_5, window_bounds = array<i64: 1, 1, 24, 64>}]} {
    %c0 = arith.constant 0 : index
    %c0_0 = arith.constant 0 : index
    %0 = vector.load %arg2[%c0, %c0_0] : memref<128x16xf32, #tpu.memory_space<vmem>>, vector<128x16xf32>
    %c0_1 = arith.constant 0 : index
    %c0_2 = arith.constant 0 : index
    %c0_3 = arith.constant 0 : index
    %1 = vector.load %arg3[%c0_1, %c0_2, %c0_3] : memref<1x16x24xf32, #tpu.memory_space<vmem>>, vector<1x16x24xf32>
    %2 = vector.shape_cast %1 : vector<1x16x24xf32> to vector<16x24xf32>
    %cst = arith.constant dense<0.000000e+00> : vector<128x24xf32>
    %3 = tpu.matmul %0, %2, %cst {dimension_numbers = #tpu.dot_dimension_numbers<[1], [0], [0], [1], [0, 0, 1, 1], [], []>} : vector<128x16xf32>, vector<16x24xf32>, vector<128x24xf32> -> vector<128x24xf32>
    %4 = vector.shape_cast %3 : vector<128x24xf32> to vector<8x16x24xf32>
    %5 = tpu.transpose %4, [0, 2, 1] : vector<8x16x24xf32> -> vector<8x24x16xf32>
    %6 = vector.extract_strided_slice %5 {offsets = [0, 0, 0], sizes = [8, 8, 16], strides = [1, 1, 1]} : vector<8x24x16xf32> to vector<8x8x16xf32>
    %7 = vector.shape_cast %6 : vector<8x8x16xf32> to vector<64x16xf32>
    %c0_4 = arith.constant 0 : index
    %c0_5 = arith.constant 0 : index
    %c0_6 = arith.constant 0 : index
    %8 = vector.load %arg4[%c0_4, %c0_5, %c0_6] : memref<1x24x16xf32, #tpu.memory_space<vmem>>, vector<1x8x16xf32>
    %9 = vector.shape_cast %8 : vector<1x8x16xf32> to vector<8x16xf32>
    %cst_7 = arith.constant dense<0.000000e+00> : vector<8x64xf32>
    %10 = tpu.matmul %9, %7, %cst_7 {dimension_numbers = #tpu.dot_dimension_numbers<[1], [1], [0], [0], [0, 0, 1, 0], [], []>} : vector<8x16xf32>, vector<64x16xf32>, vector<8x64xf32> -> vector<8x64xf32>
    %c0_8 = arith.constant 0 : index
    %c0_9 = arith.constant 0 : index
    %c0_10 = arith.constant 0 : index
    %11 = vector.load %arg5[%c0_8, %c0_9, %c0_10] : memref<1x24x1xf32, #tpu.memory_space<vmem>>, vector<1x8x1xf32>
    %12 = vector.shape_cast %11 : vector<1x8x1xf32> to vector<8x1xf32>
    %13 = vector.broadcast %12 : vector<8x1xf32> to vector<8x64xf32>
    %14 = arith.mulf %10, %13 : vector<8x64xf32>
    %c0_11 = arith.constant 0 : index
    %c0_12 = arith.constant 0 : index
    %c0_13 = arith.constant 0 : index
    %15 = vector.load %arg6[%c0_11, %c0_12, %c0_13] : memref<1x3x64xf32, #tpu.memory_space<vmem>>, vector<1x1x64xf32>
    %16 = vector.shape_cast %15 : vector<1x1x64xf32> to vector<1x64xf32>
    %17 = vector.broadcast %16 : vector<1x64xf32> to vector<8x64xf32>
    %18 = arith.mulf %14, %17 : vector<8x64xf32>
    %c0_14 = arith.constant 0 : index
    %c0_15 = arith.constant 0 : index
    %c0_16 = arith.constant 0 : index
    %c0_17 = arith.constant 0 : index
    %19 = vector.load %arg7[%c0_14, %c0_15, %c0_16, %c0_17] : memref<1x1x24x64xf32, #tpu.memory_space<vmem>>, vector<1x1x8x64xf32>
    %20 = vector.shape_cast %19 : vector<1x1x8x64xf32> to vector<8x64xf32>
    %21 = vector.shape_cast %18 : vector<8x64xf32> to vector<1x1x8x64xf32>
    tpu.vector_store %arg7[%c0_14, %c0_15, %c0_16, %c0_17], %21 {strides = array<i32>} : memref<1x1x24x64xf32, #tpu.memory_space<vmem>>, vector<1x1x8x64xf32>,
    %22 = vector.extract_strided_slice %5 {offsets = [0, 8, 0], sizes = [8, 8, 16], strides = [1, 1, 1]} : vector<8x24x16xf32> to vector<8x8x16xf32>
    %23 = vector.shape_cast %22 : vector<8x8x16xf32> to vector<64x16xf32>
    %c0_18 = arith.constant 0 : index
    %c8 = arith.constant 8 : index
    %c0_19 = arith.constant 0 : index
    %24 = vector.load %arg4[%c0_18, %c8, %c0_19] : memref<1x24x16xf32, #tpu.memory_space<vmem>>, vector<1x8x16xf32>
    %25 = vector.shape_cast %24 : vector<1x8x16xf32> to vector<8x16xf32>
    %cst_20 = arith.constant dense<0.000000e+00> : vector<8x64xf32>
    %26 = tpu.matmul %25, %23, %cst_20 {dimension_numbers = #tpu.dot_dimension_numbers<[1], [1], [0], [0], [0, 0, 1, 0], [], []>} : vector<8x16xf32>, vector<64x16xf32>, vector<8x64xf32> -> vector<8x64xf32>
    %c0_21 = arith.constant 0 : index
    %c8_22 = arith.constant 8 : index
    %c0_23 = arith.constant 0 : index
    %27 = vector.load %arg5[%c0_21, %c8_22, %c0_23] : memref<1x24x1xf32, #tpu.memory_space<vmem>>, vector<1x8x1xf32>
    %28 = vector.shape_cast %27 : vector<1x8x1xf32> to vector<8x1xf32>
    %29 = vector.broadcast %28 : vector<8x1xf32> to vector<8x64xf32>
    %30 = arith.mulf %26, %29 : vector<8x64xf32>
    %c0_24 = arith.constant 0 : index
    %c1 = arith.constant 1 : index
    %c0_25 = arith.constant 0 : index
    %31 = vector.load %arg6[%c0_24, %c1, %c0_25] : memref<1x3x64xf32, #tpu.memory_space<vmem>>, vector<1x1x64xf32>
    %32 = vector.shape_cast %31 : vector<1x1x64xf32> to vector<1x64xf32>
    %33 = vector.broadcast %32 : vector<1x64xf32> to vector<8x64xf32>
    %34 = arith.mulf %30, %33 : vector<8x64xf32>
    %c0_26 = arith.constant 0 : index
    %c0_27 = arith.constant 0 : index
    %c8_28 = arith.constant 8 : index
    %c0_29 = arith.constant 0 : index
    %35 = vector.load %arg7[%c0_26, %c0_27, %c8_28, %c0_29] : memref<1x1x24x64xf32, #tpu.memory_space<vmem>>, vector<1x1x8x64xf32>
    %36 = vector.shape_cast %35 : vector<1x1x8x64xf32> to vector<8x64xf32>
    %37 = vector.shape_cast %34 : vector<8x64xf32> to vector<1x1x8x64xf32>
    tpu.vector_store %arg7[%c0_26, %c0_27, %c8_28, %c0_29], %37 {strides = array<i32>} : memref<1x1x24x64xf32, #tpu.memory_space<vmem>>, vector<1x1x8x64xf32>,
    %38 = vector.extract_strided_slice %5 {offsets = [0, 16, 0], sizes = [8, 8, 16], strides = [1, 1, 1]} : vector<8x24x16xf32> to vector<8x8x16xf32>
    %39 = vector.shape_cast %38 : vector<8x8x16xf32> to vector<64x16xf32>
    %c0_30 = arith.constant 0 : index
    %c16 = arith.constant 16 : index
    %c0_31 = arith.constant 0 : index
    %40 = vector.load %arg4[%c0_30, %c16, %c0_31] : memref<1x24x16xf32, #tpu.memory_space<vmem>>, vector<1x8x16xf32>
    %41 = vector.shape_cast %40 : vector<1x8x16xf32> to vector<8x16xf32>
    %cst_32 = arith.constant dense<0.000000e+00> : vector<8x64xf32>
    %42 = tpu.matmul %41, %39, %cst_32 {dimension_numbers = #tpu.dot_dimension_numbers<[1], [1], [0], [0], [0, 0, 1, 0], [], []>} : vector<8x16xf32>, vector<64x16xf32>, vector<8x64xf32> -> vector<8x64xf32>
    %c0_33 = arith.constant 0 : index
    %c16_34 = arith.constant 16 : index
    %c0_35 = arith.constant 0 : index
    %43 = vector.load %arg5[%c0_33, %c16_34, %c0_35] : memref<1x24x1xf32, #tpu.memory_space<vmem>>, vector<1x8x1xf32>
    %44 = vector.shape_cast %43 : vector<1x8x1xf32> to vector<8x1xf32>
    %45 = vector.broadcast %44 : vector<8x1xf32> to vector<8x64xf32>
    %46 = arith.mulf %42, %45 : vector<8x64xf32>
    %c0_36 = arith.constant 0 : index
    %c2 = arith.constant 2 : index
    %c0_37 = arith.constant 0 : index
    %47 = vector.load %arg6[%c0_36, %c2, %c0_37] : memref<1x3x64xf32, #tpu.memory_space<vmem>>, vector<1x1x64xf32>
    %48 = vector.shape_cast %47 : vector<1x1x64xf32> to vector<1x64xf32>
    %49 = vector.broadcast %48 : vector<1x64xf32> to vector<8x64xf32>
    %50 = arith.mulf %46, %49 : vector<8x64xf32>
    %c0_38 = arith.constant 0 : index
    %c0_39 = arith.constant 0 : index
    %c16_40 = arith.constant 16 : index
    %c0_41 = arith.constant 0 : index
    %51 = vector.load %arg7[%c0_38, %c0_39, %c16_40, %c0_41] : memref<1x1x24x64xf32, #tpu.memory_space<vmem>>, vector<1x1x8x64xf32>
    %52 = vector.shape_cast %51 : vector<1x1x8x64xf32> to vector<8x64xf32>
    %53 = vector.shape_cast %50 : vector<8x64xf32> to vector<1x1x8x64xf32>
    tpu.vector_store %arg7[%c0_38, %c0_39, %c16_40, %c0_41], %53 {strides = array<i32>} : memref<1x1x24x64xf32, #tpu.memory_space<vmem>>, vector<1x1x8x64xf32>,
    return
  }
  func.func @transform_0(%arg0: i32, %arg1: i32) -> (i32, i32) {
    %c0_i32 = arith.constant 0 : i32
    %c0_i32_0 = arith.constant 0 : i32
    return %arg0, %c0_i32 : i32, i32
  }
  func.func @transform_1(%arg0: i32, %arg1: i32) -> (i32, i32, i32) {
    %c0_i32 = arith.constant 0 : i32
    %c0_i32_0 = arith.constant 0 : i32
    %c0_i32_1 = arith.constant 0 : i32
    return %arg1, %c0_i32, %c0_i32_0 : i32, i32, i32
  }
  func.func @transform_2(%arg0: i32, %arg1: i32) -> (i32, i32, i32) {
    %c0_i32 = arith.constant 0 : i32
    %c0_i32_0 = arith.constant 0 : i32
    %c0_i32_1 = arith.constant 0 : i32
    return %arg1, %c0_i32, %c0_i32_0 : i32, i32, i32
  }
  func.func @transform_3(%arg0: i32, %arg1: i32) -> (i32, i32, i32) {
    %c0_i32 = arith.constant 0 : i32
    %c0_i32_0 = arith.constant 0 : i32
    %c0_i32_1 = arith.constant 0 : i32
    return %arg1, %c0_i32, %c0_i32_0 : i32, i32, i32
  }
  func.func @transform_4(%arg0: i32, %arg1: i32) -> (i32, i32, i32) {
    %c0_i32 = arith.constant 0 : i32
    %c0_i32_0 = arith.constant 0 : i32
    %c0_i32_1 = arith.constant 0 : i32
    return %arg1, %c0_i32, %c0_i32_0 : i32, i32, i32
  }
  func.func @transform_5(%arg0: i32, %arg1: i32) -> (i32, i32, i32, i32) {
    %c0_i32 = arith.constant 0 : i32
    %c0_i32_0 = arith.constant 0 : i32
    %c0_i32_1 = arith.constant 0 : i32
    return %arg1, %arg0, %c0_i32, %c0_i32_0 : i32, i32, i32, i32
  }
}

</mosaic_0001>

<llo_original>
// kernel: tpu_custom_call.1
$region0: #{tpu_custom_call.1}
  #allocation0 [shape = 'u32[]', space=smem, size = 0x4, offset = 0x4, fixed_abs, tag = 'smem constant byte address 0x4 - core index']
  #allocation1 [shape = 'u32[144,128]{1,0:T(1,128)}', space=vmem, size = 0x12000, scoped, tag = 'internal scratch']
  %s0 = inlined_call_operand.vmem [shape: f32[128,16], index: 0, kind: input, shape index: {}]
  %s1 = inlined_call_operand.vmem [shape: f32[1,16,24], index: 1, kind: input, shape index: {}]
  %s2 = inlined_call_operand.vmem [shape: f32[1,24,16], index: 2, kind: input, shape index: {}]
  %s3 = inlined_call_operand.vmem [shape: f32[1,24,1], index: 3, kind: input, shape index: {}]
  %s4 = inlined_call_operand.vmem [shape: f32[1,3,64], index: 4, kind: input, shape index: {}]
  %s5 = inlined_call_operand.hbm [shape: f32[1,1,24,64], index: 5, kind: output, shape index: {}]
  %s6 = sld [smem:[#allocation0]]
  $region30: #{tpu_custom_call.1} parent=0
    _
  %s8 = ssub.s32 1, %s6
  %s9 = scalar_select 0, %s8, %s6
  $region1: #{tpu_custom_call.1} parent=0
    #allocation2 [shape = 'u8[12288]{0}', space=vmem, size = 0x3000, scoped, tag = 'output window, operand 0, single buffered']
    #allocation3 [shape = 's32[1]{0}', space=sflag, size = 0x4, scoped, tag = 'scoped memory for tpu_custom_call.1']
    %10 = vsyncpa [#allocation3], 0
    // Predicated region
    $region2: #{tpu_custom_call.1} parent=1 // pred_check
      _
    $region3: #{tpu_custom_call.1} parent=1 // pred_check_branch
      %12 = sbr.rel (0) target = $region5
    $region4: #{tpu_custom_call.1} parent=1 // pred_region
      _
    $region5: #{tpu_custom_call.1} parent=1 // pred_fallthru
      _
    // Predicated region
    $region6: #{tpu_custom_call.1} parent=1 // pred_check
      _
    $region7: #{tpu_custom_call.1} parent=1 // pred_check_branch
      %14 = sbr.rel (0) target = $region9
    $region8: #{tpu_custom_call.1} parent=1 // pred_region
      _
    $region9: #{tpu_custom_call.1} parent=1 // pred_fallthru
      _
    // Predicated region
    $region10: #{tpu_custom_call.1} parent=1 // pred_check
      _
    $region11: #{tpu_custom_call.1} parent=1 // pred_check_branch
      %16 = sbr.rel (0) target = $region13
    $region12: #{tpu_custom_call.1} parent=1 // pred_region
      _
    $region13: #{tpu_custom_call.1} parent=1 // pred_fallthru
      _
    // Predicated region
    $region14: #{tpu_custom_call.1} parent=1 // pred_check
      _
    $region15: #{tpu_custom_call.1} parent=1 // pred_check_branch
      %18 = sbr.rel (0) target = $region17
    $region16: #{tpu_custom_call.1} parent=1 // pred_region
      _
    $region17: #{tpu_custom_call.1} parent=1 // pred_fallthru
      _
    // Predicated region
    $region18: #{tpu_custom_call.1} parent=1 // pred_check
      _
    $region19: #{tpu_custom_call.1} parent=1 // pred_check_branch
      %20 = sbr.rel (0) target = $region21
    $region20: #{tpu_custom_call.1} parent=1 // pred_region
      _
    $region21: #{tpu_custom_call.1} parent=1 // pred_fallthru
      _
    %v21 = vld [vmem:[%s0] sm:$0xff]
    %v22 = vld [vmem:[%s0 + $0x8] sm:$0xff]
    %v23 = vld [vmem:[%s0 + $0x10] sm:$0xff]
    %v24 = vld [vmem:[%s0 + $0x18] sm:$0xff]
    %v25 = vld [vmem:[%s0 + $0x20] sm:$0xff]
    %v26 = vld [vmem:[%s0 + $0x28] sm:$0xff]
    %v27 = vld [vmem:[%s0 + $0x30] sm:$0xff]
    %v28 = vld [vmem:[%s0 + $0x38] sm:$0xff]
    %v29 = vld [vmem:[%s0 + $0x40] sm:$0xff]
    %v30 = vld [vmem:[%s0 + $0x48] sm:$0xff]
    %v31 = vld [vmem:[%s0 + $0x50] sm:$0xff]
    %v32 = vld [vmem:[%s0 + $0x58] sm:$0xff]
    %v33 = vld [vmem:[%s0 + $0x60] sm:$0xff]
    %v34 = vld [vmem:[%s0 + $0x68] sm:$0xff]
    %v35 = vld [vmem:[%s0 + $0x70] sm:$0xff]
    %v36 = vld [vmem:[%s0 + $0x78] sm:$0xff]
    %v37 = vld [vmem:[%s1] sm:$0xff]
    %v38 = vld [vmem:[%s1 + $0x8] sm:$0xff]
    %vm39 = vcmask 130048
    %v41 = vsel %vm39, %v21, 0
    %v44 = vsel %vm39, %v22, 0
    %v47 = vsel %vm39, %v23, 0
    %v50 = vsel %vm39, %v24, 0
    %v53 = vsel %vm39, %v25, 0
    %v56 = vsel %vm39, %v26, 0
    %v59 = vsel %vm39, %v27, 0
    %v62 = vsel %vm39, %v28, 0
    %v65 = vsel %vm39, %v29, 0
    %v68 = vsel %vm39, %v30, 0
    %v71 = vsel %vm39, %v31, 0
    %v74 = vsel %vm39, %v32, 0
    %v77 = vsel %vm39, %v33, 0
    %v80 = vsel %vm39, %v34, 0
    %v83 = vsel %vm39, %v35, 0
    %v86 = vsel %vm39, %v36, 0
    %88 = vmatprep.subr.mxu0 0.0
    %89 = vmatpush1.msra.mxu0 %v37
    %90 = vmatprep.subr.mxu0 0.0
    %91 = vmatpush1.msra.mxu0 %v38
    %92 = vmatprep.subr.mxu0 0.0
    %93 = vmatpush1.msra.mxu0 0.0
    %94 = vmatprep.subr.mxu0 0.0
    %95 = vmatpush1.msra.mxu0 0.0
    %96 = vmatprep.subr.mxu0 0.0
    %97 = vmatpush1.msra.mxu0 0.0
    %98 = vmatprep.subr.mxu0 0.0
    %99 = vmatpush1.msra.mxu0 0.0
    %100 = vmatprep.subr.mxu0 0.0
    %101 = vmatpush1.msra.mxu0 0.0
    %102 = vmatprep.subr.mxu0 0.0
    %103 = vmatpush1.msra.mxu0 0.0
    %104 = vmatprep.subr.mxu0 0.0
    %105 = vmatpush1.msra.mxu0 0.0
    %106 = vmatprep.subr.mxu0 0.0
    %107 = vmatpush1.msra.mxu0 0.0
    %108 = vmatprep.subr.mxu0 0.0
    %109 = vmatpush1.msra.mxu0 0.0
    %110 = vmatprep.subr.mxu0 0.0
    %111 = vmatpush1.msra.mxu0 0.0
    %112 = vmatprep.subr.mxu0 0.0
    %113 = vmatpush1.msra.mxu0 0.0
    %114 = vmatprep.subr.mxu0 0.0
    %115 = vmatpush1.msra.mxu0 0.0
    %116 = vmatprep.subr.mxu0 0.0
    %117 = vmatpush1.msra.mxu0 0.0
    %118 = vmatprep.subr.mxu0 0.0
    %119 = vmatpush1.msra.mxu0 0.0
    %120 = vmatprep.subr.mxu0 0.0
    %121 = vmatpush1.msra.mxu0 0.0
    %122 = vmatprep.subr.mxu0 0.0
    %123 = vmatpush1.msra.mxu0 0.0
    %124 = vmatprep.subr.mxu0 0.0
    %125 = vmatpush1.msra.mxu0 0.0
    %126 = vmatprep.subr.mxu0 0.0
    %127 = vmatpush1.msra.mxu0 0.0
    %128 = vmatprep.subr.mxu0 0.0
    %129 = vmatpush1.msra.mxu0 0.0
    %130 = vmatprep.subr.mxu0 0.0
    %131 = vmatpush1.msra.mxu0 0.0
    %132 = vmatprep.subr.mxu0 0.0
    %133 = vmatpush1.msra.mxu0 0.0
    %134 = vmatprep.subr.mxu0 0.0
    %135 = vmatpush1.msra.mxu0 0.0
    %136 = vmatprep.subr.mxu0 0.0
    %137 = vmatpush1.msra.mxu0 0.0
    %138 = vmatprep.subr.mxu0 0.0
    %139 = vmatpush1.msra.mxu0 0.0
    %140 = vmatprep.subr.mxu0 0.0
    %141 = vmatpush1.msra.mxu0 0.0
    %142 = vmatprep.subr.mxu0 0.0
    %143 = vmatpush1.msra.mxu0 0.0
    %144 = vmatprep.subr.mxu0 0.0
    %145 = vmatpush1.msra.mxu0 0.0
    %146 = vmatprep.subr.mxu0 0.0
    %147 = vmatpush1.msra.mxu0 0.0
    %148 = vmatprep.subr.mxu0 0.0
    %149 = vmatpush1.msra.mxu0 0.0
    %150 = vmatprep.subr.mxu0 0.0
    %151 = vmatpush1.msra.mxu0 0.0
    %152 = vmatprep.mubr.f32.mxu0 0.0
    %153 = vmatmul.mubr.f32.gmra.mrb[0].mxu0 %v41
    %v154 = vpop.f32.mrb[0].mxu0
    %v155 = vadd.f32 0.0, %v154
    %v156 = vpop.f32.mrb[0].mxu0
    %157 = vmatprep.mubr.f32.mxu0 0.0
    %158 = vmatmul.mubr.f32.gmra.mrb[0].mxu0 %v44
    %v159 = vpop.f32.mrb[0].mxu0
    %v160 = vadd.f32 0.0, %v159
    %v161 = vpop.f32.mrb[0].mxu0
    %162 = vmatprep.mubr.f32.mxu0 0.0
    %163 = vmatmul.mubr.f32.gmra.mrb[0].mxu0 %v47
    %v164 = vpop.f32.mrb[0].mxu0
    %v165 = vadd.f32 0.0, %v164
    %v166 = vpop.f32.mrb[0].mxu0
    %167 = vmatprep.mubr.f32.mxu0 0.0
    %168 = vmatmul.mubr.f32.gmra.mrb[0].mxu0 %v50
    %v169 = vpop.f32.mrb[0].mxu0
    %v170 = vadd.f32 0.0, %v169
    %v171 = vpop.f32.mrb[0].mxu0
    %172 = vmatprep.mubr.f32.mxu0 0.0
    %173 = vmatmul.mubr.f32.gmra.mrb[0].mxu0 %v53
    %v174 = vpop.f32.mrb[0].mxu0
    %v175 = vadd.f32 0.0, %v174
    %v176 = vpop.f32.mrb[0].mxu0
    %177 = vmatprep.mubr.f32.mxu0 0.0
    %178 = vmatmul.mubr.f32.gmra.mrb[0].mxu0 %v56
    %v179 = vpop.f32.mrb[0].mxu0
    %v180 = vadd.f32 0.0, %v179
    %v181 = vpop.f32.mrb[0].mxu0
    %182 = vmatprep.mubr.f32.mxu0 0.0
    %183 = vmatmul.mubr.f32.gmra.mrb[0].mxu0 %v59
    %v184 = vpop.f32.mrb[0].mxu0
    %v185 = vadd.f32 0.0, %v184
    %v186 = vpop.f32.mrb[0].mxu0
    %187 = vmatprep.mubr.f32.mxu0 0.0
    %188 = vmatmul.mubr.f32.gmra.mrb[0].mxu0 %v62
    %v189 = vpop.f32.mrb[0].mxu0
    %v190 = vadd.f32 0.0, %v189
    %v191 = vpop.f32.mrb[0].mxu0
    %192 = vmatprep.mubr.f32.mxu0 0.0
    %193 = vmatmul.mubr.f32.gmra.mrb[0].mxu0 %v65
    %v194 = vpop.f32.mrb[0].mxu0
    %v195 = vadd.f32 0.0, %v194
    %v196 = vpop.f32.mrb[0].mxu0
    %197 = vmatprep.mubr.f32.mxu0 0.0
    %198 = vmatmul.mubr.f32.gmra.mrb[0].mxu0 %v68
    %v199 = vpop.f32.mrb[0].mxu0
    %v200 = vadd.f32 0.0, %v199
    %v201 = vpop.f32.mrb[0].mxu0
    %202 = vmatprep.mubr.f32.mxu0 0.0
    %203 = vmatmul.mubr.f32.gmra.mrb[0].mxu0 %v71
    %v204 = vpop.f32.mrb[0].mxu0
    %v205 = vadd.f32 0.0, %v204
    %v206 = vpop.f32.mrb[0].mxu0
    %207 = vmatprep.mubr.f32.mxu0 0.0
    %208 = vmatmul.mubr.f32.gmra.mrb[0].mxu0 %v74
    %v209 = vpop.f32.mrb[0].mxu0
    %v210 = vadd.f32 0.0, %v209
    %v211 = vpop.f32.mrb[0].mxu0
    %212 = vmatprep.mubr.f32.mxu0 0.0
    %213 = vmatmul.mubr.f32.gmra.mrb[0].mxu0 %v77
    %v214 = vpop.f32.mrb[0].mxu0
    %v215 = vadd.f32 0.0, %v214
    %v216 = vpop.f32.mrb[0].mxu0
    %217 = vmatprep.mubr.f32.mxu0 0.0
    %218 = vmatmul.mubr.f32.gmra.mrb[0].mxu0 %v80
    %v219 = vpop.f32.mrb[0].mxu0
    %v220 = vadd.f32 0.0, %v219
    %v221 = vpop.f32.mrb[0].mxu0
    %222 = vmatprep.mubr.f32.mxu0 0.0
    %223 = vmatmul.mubr.f32.gmra.mrb[0].mxu0 %v83
    %v224 = vpop.f32.mrb[0].mxu0
    %v225 = vadd.f32 0.0, %v224
    %v226 = vpop.f32.mrb[0].mxu0
    %227 = vmatprep.mubr.f32.mxu0 0.0
    %228 = vmatmul.mubr.f32.gmra.mrb[0].mxu0 %v86
    %v229 = vpop.f32.mrb[0].mxu0
    %v230 = vadd.f32 0.0, %v229
    %v231 = vpop.f32.mrb[0].mxu0
    %232 = vdwg.mxu0
    %233 = vxpose.xlu0.b32.start [1/16] %v155, 128
    %234 = vxpose.xlu0.b32.cont [2/16] %v160, 128
    %235 = vxpose.xlu0.b32.cont [3/16] 0.0, 128
    %236 = vxpose.xlu0.b32.cont [4/16] 0.0, 128
    %237 = vxpose.xlu0.b32.cont [5/16] 0.0, 128
    %238 = vxpose.xlu0.b32.cont [6/16] 0.0, 128
    %239 = vxpose.xlu0.b32.cont [7/16] 0.0, 128
    %240 = vxpose.xlu0.b32.cont [8/16] 0.0, 128
    %241 = vxpose.xlu0.b32.cont [9/16] 0.0, 128
    %242 = vxpose.xlu0.b32.cont [10/16] 0.0, 128
    %243 = vxpose.xlu0.b32.cont [11/16] 0.0, 128
    %244 = vxpose.xlu0.b32.cont [12/16] 0.0, 128
    %245 = vxpose.xlu0.b32.cont [13/16] 0.0, 128
    %246 = vxpose.xlu0.b32.cont [14/16] 0.0, 128
    %247 = vxpose.xlu0.b32.cont [15/16] 0.0, 128
    %248 = vxpose.xlu0.b32.end [16/16] 0.0, 128
    %v249 = vpop.trf.xlu0
    %v250 = vpop.trf.xlu0
    %v251 = vpop.trf.xlu0
    %v252 = vpop.trf.xlu0
    %v253 = vpop.trf.xlu0
    %v254 = vpop.trf.xlu0
    %v255 = vpop.trf.xlu0
    %v256 = vpop.trf.xlu0
    %v257 = vpop.trf.xlu0
    %v258 = vpop.trf.xlu0
    %v259 = vpop.trf.xlu0
    %v260 = vpop.trf.xlu0
    %v261 = vpop.trf.xlu0
    %v262 = vpop.trf.xlu0
    %v263 = vpop.trf.xlu0
    %v264 = vpop.trf.xlu0
    %265 = vxpose.xlu0.b32.start [1/16] %v165, 128
    %266 = vxpose.xlu0.b32.cont [2/16] %v170, 128
    %267 = vxpose.xlu0.b32.cont [3/16] 0.0, 128
    %268 = vxpose.xlu0.b32.cont [4/16] 0.0, 128
    %269 = vxpose.xlu0.b32.cont [5/16] 0.0, 128
    %270 = vxpose.xlu0.b32.cont [6/16] 0.0, 128
    %271 = vxpose.xlu0.b32.cont [7/16] 0.0, 128
    %272 = vxpose.xlu0.b32.cont [8/16] 0.0, 128
    %273 = vxpose.xlu0.b32.cont [9/16] 0.0, 128
    %274 = vxpose.xlu0.b32.cont [10/16] 0.0, 128
    %275 = vxpose.xlu0.b32.cont [11/16] 0.0, 128
    %276 = vxpose.xlu0.b32.cont [12/16] 0.0, 128
    %277 = vxpose.xlu0.b32.cont [13/16] 0.0, 128
    %278 = vxpose.xlu0.b32.cont [14/16] 0.0, 128
    %279 = vxpose.xlu0.b32.cont [15/16] 0.0, 128
    %280 = vxpose.xlu0.b32.end [16/16] 0.0, 128
    %v281 = vpop.trf.xlu0
    %v282 = vpop.trf.xlu0
    %v283 = vpop.trf.xlu0
    %v284 = vpop.trf.xlu0
    %v285 = vpop.trf.xlu0
    %v286 = vpop.trf.xlu0
    %v287 = vpop.trf.xlu0
    %v288 = vpop.trf.xlu0
    %v289 = vpop.trf.xlu0
    %v290 = vpop.trf.xlu0
    %v291 = vpop.trf.xlu0
    %v292 = vpop.trf.xlu0
    %v293 = vpop.trf.xlu0
    %v294 = vpop.trf.xlu0
    %v295 = vpop.trf.xlu0
    %v296 = vpop.trf.xlu0
    %297 = vxpose.xlu0.b32.start [1/16] %v175, 128
    %298 = vxpose.xlu0.b32.cont [2/16] %v180, 128
    %299 = vxpose.xlu0.b32.cont [3/16] 0.0, 128
    %300 = vxpose.xlu0.b32.cont [4/16] 0.0, 128
    %301 = vxpose.xlu0.b32.cont [5/16] 0.0, 128
    %302 = vxpose.xlu0.b32.cont [6/16] 0.0, 128
    %303 = vxpose.xlu0.b32.cont [7/16] 0.0, 128
    %304 = vxpose.xlu0.b32.cont [8/16] 0.0, 128
    %305 = vxpose.xlu0.b32.cont [9/16] 0.0, 128
    %306 = vxpose.xlu0.b32.cont [10/16] 0.0, 128
    %307 = vxpose.xlu0.b32.cont [11/16] 0.0, 128
    %308 = vxpose.xlu0.b32.cont [12/16] 0.0, 128
    %309 = vxpose.xlu0.b32.cont [13/16] 0.0, 128
    %310 = vxpose.xlu0.b32.cont [14/16] 0.0, 128
    %311 = vxpose.xlu0.b32.cont [15/16] 0.0, 128
    %312 = vxpose.xlu0.b32.end [16/16] 0.0, 128
    %v313 = vpop.trf.xlu0
    %v314 = vpop.trf.xlu0
    %v315 = vpop.trf.xlu0
    %v316 = vpop.trf.xlu0
    %v317 = vpop.trf.xlu0
    %v318 = vpop.trf.xlu0
    %v319 = vpop.trf.xlu0
    %v320 = vpop.trf.xlu0
    %v321 = vpop.trf.xlu0
    %v322 = vpop.trf.xlu0
    %v323 = vpop.trf.xlu0
    %v324 = vpop.trf.xlu0
    %v325 = vpop.trf.xlu0
    %v326 = vpop.trf.xlu0
    %v327 = vpop.trf.xlu0
    %v328 = vpop.trf.xlu0
    %329 = vxpose.xlu0.b32.start [1/16] %v185, 128
    %330 = vxpose.xlu0.b32.cont [2/16] %v190, 128
    %331 = vxpose.xlu0.b32.cont [3/16] 0.0, 128
    %332 = vxpose.xlu0.b32.cont [4/16] 0.0, 128
    %333 = vxpose.xlu0.b32.cont [5/16] 0.0, 128
    %334 = vxpose.xlu0.b32.cont [6/16] 0.0, 128
    %335 = vxpose.xlu0.b32.cont [7/16] 0.0, 128
    %336 = vxpose.xlu0.b32.cont [8/16] 0.0, 128
    %337 = vxpose.xlu0.b32.cont [9/16] 0.0, 128
    %338 = vxpose.xlu0.b32.cont [10/16] 0.0, 128
    %339 = vxpose.xlu0.b32.cont [11/16] 0.0, 128
    %340 = vxpose.xlu0.b32.cont [12/16] 0.0, 128
    %341 = vxpose.xlu0.b32.cont [13/16] 0.0, 128
    %342 = vxpose.xlu0.b32.cont [14/16] 0.0, 128
    %343 = vxpose.xlu0.b32.cont [15/16] 0.0, 128
    %344 = vxpose.xlu0.b32.end [16/16] 0.0, 128
    %v345 = vpop.trf.xlu0
    %v346 = vpop.trf.xlu0
    %v347 = vpop.trf.xlu0
    %v348 = vpop.trf.xlu0
    %v349 = vpop.trf.xlu0
    %v350 = vpop.trf.xlu0
    %v351 = vpop.trf.xlu0
    %v352 = vpop.trf.xlu0
    %v353 = vpop.trf.xlu0
    %v354 = vpop.trf.xlu0
    %v355 = vpop.trf.xlu0
    %v356 = vpop.trf.xlu0
    %v357 = vpop.trf.xlu0
    %v358 = vpop.trf.xlu0
    %v359 = vpop.trf.xlu0
    %v360 = vpop.trf.xlu0
    %361 = vxpose.xlu0.b32.start [1/16] %v195, 128
    %362 = vxpose.xlu0.b32.cont [2/16] %v200, 128
    %363 = vxpose.xlu0.b32.cont [3/16] 0.0, 128
    %364 = vxpose.xlu0.b32.cont [4/16] 0.0, 128
    %365 = vxpose.xlu0.b32.cont [5/16] 0.0, 128
    %366 = vxpose.xlu0.b32.cont [6/16] 0.0, 128
    %367 = vxpose.xlu0.b32.cont [7/16] 0.0, 128
    %368 = vxpose.xlu0.b32.cont [8/16] 0.0, 128
    %369 = vxpose.xlu0.b32.cont [9/16] 0.0, 128
    %370 = vxpose.xlu0.b32.cont [10/16] 0.0, 128
    %371 = vxpose.xlu0.b32.cont [11/16] 0.0, 128
    %372 = vxpose.xlu0.b32.cont [12/16] 0.0, 128
    %373 = vxpose.xlu0.b32.cont [13/16] 0.0, 128
    %374 = vxpose.xlu0.b32.cont [14/16] 0.0, 128
    %375 = vxpose.xlu0.b32.cont [15/16] 0.0, 128
    %376 = vxpose.xlu0.b32.end [16/16] 0.0, 128
    %v377 = vpop.trf.xlu0
    %v378 = vpop.trf.xlu0
    %v379 = vpop.trf.xlu0
    %v380 = vpop.trf.xlu0
    %v381 = vpop.trf.xlu0
    %v382 = vpop.trf.xlu0
    %v383 = vpop.trf.xlu0
    %v384 = vpop.trf.xlu0
    %v385 = vpop.trf.xlu0
    %v386 = vpop.trf.xlu0
    %v387 = vpop.trf.xlu0
    %v388 = vpop.trf.xlu0
    %v389 = vpop.trf.xlu0
    %v390 = vpop.trf.xlu0
    %v391 = vpop.trf.xlu0
    %v392 = vpop.trf.xlu0
    %393 = vxpose.xlu0.b32.start [1/16] %v205, 128
    %394 = vxpose.xlu0.b32.cont [2/16] %v210, 128
    %395 = vxpose.xlu0.b32.cont [3/16] 0.0, 128
    %396 = vxpose.xlu0.b32.cont [4/16] 0.0, 128
    %397 = vxpose.xlu0.b32.cont [5/16] 0.0, 128
    %398 = vxpose.xlu0.b32.cont [6/16] 0.0, 128
    %399 = vxpose.xlu0.b32.cont [7/16] 0.0, 128
    %400 = vxpose.xlu0.b32.cont [8/16] 0.0, 128
    %401 = vxpose.xlu0.b32.cont [9/16] 0.0, 128
    %402 = vxpose.xlu0.b32.cont [10/16] 0.0, 128
    %403 = vxpose.xlu0.b32.cont [11/16] 0.0, 128
    %404 = vxpose.xlu0.b32.cont [12/16] 0.0, 128
    %405 = vxpose.xlu0.b32.cont [13/16] 0.0, 128
    %406 = vxpose.xlu0.b32.cont [14/16] 0.0, 128
    %407 = vxpose.xlu0.b32.cont [15/16] 0.0, 128
    %408 = vxpose.xlu0.b32.end [16/16] 0.0, 128
    %v409 = vpop.trf.xlu0
    %v410 = vpop.trf.xlu0
    %v411 = vpop.trf.xlu0
    %v412 = vpop.trf.xlu0
    %v413 = vpop.trf.xlu0
    %v414 = vpop.trf.xlu0
    %v415 = vpop.trf.xlu0
    %v416 = vpop.trf.xlu0
    %v417 = vpop.trf.xlu0
    %v418 = vpop.trf.xlu0
    %v419 = vpop.trf.xlu0
    %v420 = vpop.trf.xlu0
    %v421 = vpop.trf.xlu0
    %v422 = vpop.trf.xlu0
    %v423 = vpop.trf.xlu0
    %v424 = vpop.trf.xlu0
    %425 = vxpose.xlu0.b32.start [1/16] %v215, 128
    %426 = vxpose.xlu0.b32.cont [2/16] %v220, 128
    %427 = vxpose.xlu0.b32.cont [3/16] 0.0, 128
    %428 = vxpose.xlu0.b32.cont [4/16] 0.0, 128
    %429 = vxpose.xlu0.b32.cont [5/16] 0.0, 128
    %430 = vxpose.xlu0.b32.cont [6/16] 0.0, 128
    %431 = vxpose.xlu0.b32.cont [7/16] 0.0, 128
    %432 = vxpose.xlu0.b32.cont [8/16] 0.0, 128
    %433 = vxpose.xlu0.b32.cont [9/16] 0.0, 128
    %434 = vxpose.xlu0.b32.cont [10/16] 0.0, 128
    %435 = vxpose.xlu0.b32.cont [11/16] 0.0, 128
    %436 = vxpose.xlu0.b32.cont [12/16] 0.0, 128
    %437 = vxpose.xlu0.b32.cont [13/16] 0.0, 128
    %438 = vxpose.xlu0.b32.cont [14/16] 0.0, 128
    %439 = vxpose.xlu0.b32.cont [15/16] 0.0, 128
    %440 = vxpose.xlu0.b32.end [16/16] 0.0, 128
    %v441 = vpop.trf.xlu0
    %v442 = vpop.trf.xlu0
    %v443 = vpop.trf.xlu0
    %v444 = vpop.trf.xlu0
    %v445 = vpop.trf.xlu0
    %v446 = vpop.trf.xlu0
    %v447 = vpop.trf.xlu0
    %v448 = vpop.trf.xlu0
    %v449 = vpop.trf.xlu0
    %v450 = vpop.trf.xlu0
    %v451 = vpop.trf.xlu0
    %v452 = vpop.trf.xlu0
    %v453 = vpop.trf.xlu0
    %v454 = vpop.trf.xlu0
    %v455 = vpop.trf.xlu0
    %v456 = vpop.trf.xlu0
    %457 = vxpose.xlu0.b32.start [1/16] %v225, 128
    %458 = vxpose.xlu0.b32.cont [2/16] %v230, 128
    %459 = vxpose.xlu0.b32.cont [3/16] 0.0, 128
    %460 = vxpose.xlu0.b32.cont [4/16] 0.0, 128
    %461 = vxpose.xlu0.b32.cont [5/16] 0.0, 128
    %462 = vxpose.xlu0.b32.cont [6/16] 0.0, 128
    %463 = vxpose.xlu0.b32.cont [7/16] 0.0, 128
    %464 = vxpose.xlu0.b32.cont [8/16] 0.0, 128
    %465 = vxpose.xlu0.b32.cont [9/16] 0.0, 128
    %466 = vxpose.xlu0.b32.cont [10/16] 0.0, 128
    %467 = vxpose.xlu0.b32.cont [11/16] 0.0, 128
    %468 = vxpose.xlu0.b32.cont [12/16] 0.0, 128
    %469 = vxpose.xlu0.b32.cont [13/16] 0.0, 128
    %470 = vxpose.xlu0.b32.cont [14/16] 0.0, 128
    %471 = vxpose.xlu0.b32.cont [15/16] 0.0, 128
    %472 = vxpose.xlu0.b32.end [16/16] 0.0, 128
    %v473 = vpop.trf.xlu0
    %v474 = vpop.trf.xlu0
    %v475 = vpop.trf.xlu0
    %v476 = vpop.trf.xlu0
    %v477 = vpop.trf.xlu0
    %v478 = vpop.trf.xlu0
    %v479 = vpop.trf.xlu0
    %v480 = vpop.trf.xlu0
    %v481 = vpop.trf.xlu0
    %v482 = vpop.trf.xlu0
    %v483 = vpop.trf.xlu0
    %v484 = vpop.trf.xlu0
    %v485 = vpop.trf.xlu0
    %v486 = vpop.trf.xlu0
    %v487 = vpop.trf.xlu0
    %v488 = vpop.trf.xlu0
    %v489 = vld [vmem:[%s2] sm:$0xff]
    %v491 = vsel %vm39, %v489, 0
    %v494 = vsel %vm39, %v249, 0
    %v497 = vsel %vm39, %v281, 0
    %v500 = vsel %vm39, %v313, 0
    %v503 = vsel %vm39, %v345, 0
    %v506 = vsel %vm39, %v377, 0
    %v509 = vsel %vm39, %v409, 0
    %v512 = vsel %vm39, %v441, 0
    %v515 = vsel %vm39, %v473, 0
    %517 = vmatprep.subr.mxu0 0.0
    %518 = vmatpush1.xpose.msra.mxu0 %v494
    %519 = vmatprep.subr.mxu0 0.0
    %520 = vmatpush1.xpose.msra.mxu0 %v497
    %521 = vmatprep.subr.mxu0 0.0
    %522 = vmatpush1.xpose.msra.mxu0 %v500
    %523 = vmatprep.subr.mxu0 0.0
    %524 = vmatpush1.xpose.msra.mxu0 %v503
    %525 = vmatprep.subr.mxu0 0.0
    %526 = vmatpush1.xpose.msra.mxu0 %v506
    %527 = vmatprep.subr.mxu0 0.0
    %528 = vmatpush1.xpose.msra.mxu0 %v509
    %529 = vmatprep.subr.mxu0 0.0
    %530 = vmatpush1.xpose.msra.mxu0 %v512
    %531 = vmatprep.subr.mxu0 0.0
    %532 = vmatpush1.xpose.msra.mxu0 %v515
    %533 = vmatprep.subr.mxu0 0.0
    %534 = vmatpush1.xpose.msra.mxu0 0.0
    %535 = vmatprep.subr.mxu0 0.0
    %536 = vmatpush1.xpose.msra.mxu0 0.0
    %537 = vmatprep.subr.mxu0 0.0
    %538 = vmatpush1.xpose.msra.mxu0 0.0
    %539 = vmatprep.subr.mxu0 0.0
    %540 = vmatpush1.xpose.msra.mxu0 0.0
    %541 = vmatprep.subr.mxu0 0.0
    %542 = vmatpush1.xpose.msra.mxu0 0.0
    %543 = vmatprep.subr.mxu0 0.0
    %544 = vmatpush1.xpose.msra.mxu0 0.0
    %545 = vmatprep.subr.mxu0 0.0
    %546 = vmatpush1.xpose.msra.mxu0 0.0
    %547 = vmatprep.subr.mxu0 0.0
    %548 = vmatpush1.xpose.msra.mxu0 0.0
    %549 = vmatprep.subr.mxu0 0.0
    %550 = vmatpush1.xpose.msra.mxu0 0.0
    %551 = vmatprep.subr.mxu0 0.0
    %552 = vmatpush1.xpose.msra.mxu0 0.0
    %553 = vmatprep.subr.mxu0 0.0
    %554 = vmatpush1.xpose.msra.mxu0 0.0
    %555 = vmatprep.subr.mxu0 0.0
    %556 = vmatpush1.xpose.msra.mxu0 0.0
    %557 = vmatprep.subr.mxu0 0.0
    %558 = vmatpush1.xpose.msra.mxu0 0.0
    %559 = vmatprep.subr.mxu0 0.0
    %560 = vmatpush1.xpose.msra.mxu0 0.0
    %561 = vmatprep.subr.mxu0 0.0
    %562 = vmatpush1.xpose.msra.mxu0 0.0
    %563 = vmatprep.subr.mxu0 0.0
    %564 = vmatpush1.xpose.msra.mxu0 0.0
    %565 = vmatprep.subr.mxu0 0.0
    %566 = vmatpush1.xpose.msra.mxu0 0.0
    %567 = vmatprep.subr.mxu0 0.0
    %568 = vmatpush1.xpose.msra.mxu0 0.0
    %569 = vmatprep.subr.mxu0 0.0
    %570 = vmatpush1.xpose.msra.mxu0 0.0
    %571 = vmatprep.subr.mxu0 0.0
    %572 = vmatpush1.xpose.msra.mxu0 0.0
    %573 = vmatprep.subr.mxu0 0.0
    %574 = vmatpush1.xpose.msra.mxu0 0.0
    %575 = vmatprep.subr.mxu0 0.0
    %576 = vmatpush1.xpose.msra.mxu0 0.0
    %577 = vmatprep.subr.mxu0 0.0
    %578 = vmatpush1.xpose.msra.mxu0 0.0
    %579 = vmatprep.subr.mxu0 0.0
    %580 = vmatpush1.xpose.msra.mxu0 0.0
    %581 = vmatprep.mubr.f32.mxu0 0.0
    %582 = vmatmul.mubr.f32.gmra.mrb[0].mxu0 %v491
    %v583 = vpop.f32.mrb[0].mxu0
    %v584 = vadd.f32 0.0, %v583
    %v585 = vpop.f32.mrb[0].mxu0
    %586 = vdwg.mxu0
    %v587 = vld [vmem:[%s3] sm:$0xff]
    %589 = vset.pattern.permute.xlu0 0
    %590 = vperm.xlu0 %589, %v587
    %v591 = vpop.permute.xlu0 %590
    %v593 = vmul.f32 %v584, %v591
    %v594 = vld [vmem:[%s4] sm:$0x1]
    %v595 = vlaneseq
    %v596 = vshrl.u32 %v595, 7
    %v597 = vsub.s32 0, %v596
    %v598 = vrot.slane %v594, %v597
    %v599 = vmul.f32 %v593, %v598
    %vm600 = vcmask 523264
    %601 = vst.msk [vmem:[#allocation2] sm:$0xff] %vm600, %v599
    %v602 = vld [vmem:[%s2 + $0x8] sm:$0xff]
    %v604 = vsel %vm39, %v602, 0
    %v607 = vsel %vm39, %v250, 0
    %v610 = vsel %vm39, %v282, 0
    %v613 = vsel %vm39, %v314, 0
    %v616 = vsel %vm39, %v346, 0
    %v619 = vsel %vm39, %v378, 0
    %v622 = vsel %vm39, %v410, 0
    %v625 = vsel %vm39, %v442, 0
    %v628 = vsel %vm39, %v474, 0
    %630 = vmatprep.subr.mxu0 0.0
    %631 = vmatpush1.xpose.msra.mxu0 %v607
    %632 = vmatprep.subr.mxu0 0.0
    %633 = vmatpush1.xpose.msra.mxu0 %v610
    %634 = vmatprep.subr.mxu0 0.0
    %635 = vmatpush1.xpose.msra.mxu0 %v613
    %636 = vmatprep.subr.mxu0 0.0
    %637 = vmatpush1.xpose.msra.mxu0 %v616
    %638 = vmatprep.subr.mxu0 0.0
    %639 = vmatpush1.xpose.msra.mxu0 %v619
    %640 = vmatprep.subr.mxu0 0.0
    %641 = vmatpush1.xpose.msra.mxu0 %v622
    %642 = vmatprep.subr.mxu0 0.0
    %643 = vmatpush1.xpose.msra.mxu0 %v625
    %644 = vmatprep.subr.mxu0 0.0
    %645 = vmatpush1.xpose.msra.mxu0 %v628
    %646 = vmatprep.subr.mxu0 0.0
    %647 = vmatpush1.xpose.msra.mxu0 0.0
    %648 = vmatprep.subr.mxu0 0.0
    %649 = vmatpush1.xpose.msra.mxu0 0.0
    %650 = vmatprep.subr.mxu0 0.0
    %651 = vmatpush1.xpose.msra.mxu0 0.0
    %652 = vmatprep.subr.mxu0 0.0
    %653 = vmatpush1.xpose.msra.mxu0 0.0
    %654 = vmatprep.subr.mxu0 0.0
    %655 = vmatpush1.xpose.msra.mxu0 0.0
    %656 = vmatprep.subr.mxu0 0.0
    %657 = vmatpush1.xpose.msra.mxu0 0.0
    %658 = vmatprep.subr.mxu0 0.0
    %659 = vmatpush1.xpose.msra.mxu0 0.0
    %660 = vmatprep.subr.mxu0 0.0
    %661 = vmatpush1.xpose.msra.mxu0 0.0
    %662 = vmatprep.subr.mxu0 0.0
    %663 = vmatpush1.xpose.msra.mxu0 0.0
    %664 = vmatprep.subr.mxu0 0.0
    %665 = vmatpush1.xpose.msra.mxu0 0.0
    %666 = vmatprep.subr.mxu0 0.0
    %667 = vmatpush1.xpose.msra.mxu0 0.0
    %668 = vmatprep.subr.mxu0 0.0
    %669 = vmatpush1.xpose.msra.mxu0 0.0
    %670 = vmatprep.subr.mxu0 0.0
    %671 = vmatpush1.xpose.msra.mxu0 0.0
    %672 = vmatprep.subr.mxu0 0.0
    %673 = vmatpush1.xpose.msra.mxu0 0.0
    %674 = vmatprep.subr.mxu0 0.0
    %675 = vmatpush1.xpose.msra.mxu0 0.0
    %676 = vmatprep.subr.mxu0 0.0
    %677 = vmatpush1.xpose.msra.mxu0 0.0
    %678 = vmatprep.subr.mxu0 0.0
    %679 = vmatpush1.xpose.msra.mxu0 0.0
    %680 = vmatprep.subr.mxu0 0.0
    %681 = vmatpush1.xpose.msra.mxu0 0.0
    %682 = vmatprep.subr.mxu0 0.0
    %683 = vmatpush1.xpose.msra.mxu0 0.0
    %684 = vmatprep.subr.mxu0 0.0
    %685 = vmatpush1.xpose.msra.mxu0 0.0
    %686 = vmatprep.subr.mxu0 0.0
    %687 = vmatpush1.xpose.msra.mxu0 0.0
    %688 = vmatprep.subr.mxu0 0.0
    %689 = vmatpush1.xpose.msra.mxu0 0.0
    %690 = vmatprep.subr.mxu0 0.0
    %691 = vmatpush1.xpose.msra.mxu0 0.0
    %692 = vmatprep.subr.mxu0 0.0
    %693 = vmatpush1.xpose.msra.mxu0 0.0
    %694 = vmatprep.mubr.f32.mxu0 0.0
    %695 = vmatmul.mubr.f32.gmra.mrb[0].mxu0 %v604
    %v696 = vpop.f32.mrb[0].mxu0
    %v697 = vadd.f32 0.0, %v696
    %v698 = vpop.f32.mrb[0].mxu0
    %699 = vdwg.mxu0
    %v700 = vld [vmem:[%s3 + $0x8] sm:$0xff]
    %702 = vset.pattern.permute.xlu0 0
    %703 = vperm.xlu0 %702, %v700
    %v704 = vpop.permute.xlu0 %703
    %v706 = vmul.f32 %v697, %v704
    %v707 = vld [vmem:[%s4 + $0x1] sm:$0x1]
    %v708 = vlaneseq
    %v709 = vshrl.u32 %v708, 7
    %v710 = vsub.s32 0, %v709
    %v711 = vrot.slane %v707, %v710
    %v712 = vmul.f32 %v706, %v711
    %713 = vst.msk [vmem:[#allocation2 + $0x8] sm:$0xff] %vm600, %v712
    %v714 = vld [vmem:[%s2 + $0x10] sm:$0xff]
    %v716 = vsel %vm39, %v714, 0
    %v719 = vsel %vm39, %v251, 0
    %v722 = vsel %vm39, %v283, 0
    %v725 = vsel %vm39, %v315, 0
    %v728 = vsel %vm39, %v347, 0
    %v731 = vsel %vm39, %v379, 0
    %v734 = vsel %vm39, %v411, 0
    %v737 = vsel %vm39, %v443, 0
    %v740 = vsel %vm39, %v475, 0
    %742 = vmatprep.subr.mxu0 0.0
    %743 = vmatpush1.xpose.msra.mxu0 %v719
    %744 = vmatprep.subr.mxu0 0.0
    %745 = vmatpush1.xpose.msra.mxu0 %v722
    %746 = vmatprep.subr.mxu0 0.0
    %747 = vmatpush1.xpose.msra.mxu0 %v725
    %748 = vmatprep.subr.mxu0 0.0
    %749 = vmatpush1.xpose.msra.mxu0 %v728
    %750 = vmatprep.subr.mxu0 0.0
    %751 = vmatpush1.xpose.msra.mxu0 %v731
    %752 = vmatprep.subr.mxu0 0.0
    %753 = vmatpush1.xpose.msra.mxu0 %v734
    %754 = vmatprep.subr.mxu0 0.0
    %755 = vmatpush1.xpose.msra.mxu0 %v737
    %756 = vmatprep.subr.mxu0 0.0
    %757 = vmatpush1.xpose.msra.mxu0 %v740
    %758 = vmatprep.subr.mxu0 0.0
    %759 = vmatpush1.xpose.msra.mxu0 0.0
    %760 = vmatprep.subr.mxu0 0.0
    %761 = vmatpush1.xpose.msra.mxu0 0.0
    %762 = vmatprep.subr.mxu0 0.0
    %763 = vmatpush1.xpose.msra.mxu0 0.0
    %764 = vmatprep.subr.mxu0 0.0
    %765 = vmatpush1.xpose.msra.mxu0 0.0
    %766 = vmatprep.subr.mxu0 0.0
    %767 = vmatpush1.xpose.msra.mxu0 0.0
    %768 = vmatprep.subr.mxu0 0.0
    %769 = vmatpush1.xpose.msra.mxu0 0.0
    %770 = vmatprep.subr.mxu0 0.0
    %771 = vmatpush1.xpose.msra.mxu0 0.0
    %772 = vmatprep.subr.mxu0 0.0
    %773 = vmatpush1.xpose.msra.mxu0 0.0
    %774 = vmatprep.subr.mxu0 0.0
    %775 = vmatpush1.xpose.msra.mxu0 0.0
    %776 = vmatprep.subr.mxu0 0.0
    %777 = vmatpush1.xpose.msra.mxu0 0.0
    %778 = vmatprep.subr.mxu0 0.0
    %779 = vmatpush1.xpose.msra.mxu0 0.0
    %780 = vmatprep.subr.mxu0 0.0
    %781 = vmatpush1.xpose.msra.mxu0 0.0
    %782 = vmatprep.subr.mxu0 0.0
    %783 = vmatpush1.xpose.msra.mxu0 0.0
    %784 = vmatprep.subr.mxu0 0.0
    %785 = vmatpush1.xpose.msra.mxu0 0.0
    %786 = vmatprep.subr.mxu0 0.0
    %787 = vmatpush1.xpose.msra.mxu0 0.0
    %788 = vmatprep.subr.mxu0 0.0
    %789 = vmatpush1.xpose.msra.mxu0 0.0
    %790 = vmatprep.subr.mxu0 0.0
    %791 = vmatpush1.xpose.msra.mxu0 0.0
    %792 = vmatprep.subr.mxu0 0.0
    %793 = vmatpush1.xpose.msra.mxu0 0.0
    %794 = vmatprep.subr.mxu0 0.0
    %795 = vmatpush1.xpose.msra.mxu0 0.0
    %796 = vmatprep.subr.mxu0 0.0
    %797 = vmatpush1.xpose.msra.mxu0 0.0
    %798 = vmatprep.subr.mxu0 0.0
    %799 = vmatpush1.xpose.msra.mxu0 0.0
    %800 = vmatprep.subr.mxu0 0.0
    %801 = vmatpush1.xpose.msra.mxu0 0.0
    %802 = vmatprep.subr.mxu0 0.0
    %803 = vmatpush1.xpose.msra.mxu0 0.0
    %804 = vmatprep.subr.mxu0 0.0
    %805 = vmatpush1.xpose.msra.mxu0 0.0
    %806 = vmatprep.mubr.f32.mxu0 0.0
    %807 = vmatmul.mubr.f32.gmra.mrb[0].mxu0 %v716
    %v808 = vpop.f32.mrb[0].mxu0
    %v809 = vadd.f32 0.0, %v808
    %v810 = vpop.f32.mrb[0].mxu0
    %811 = vdwg.mxu0
    %v812 = vld [vmem:[%s3 + $0x10] sm:$0xff]
    %814 = vset.pattern.permute.xlu0 0
    %815 = vperm.xlu0 %814, %v812
    %v816 = vpop.permute.xlu0 %815
    %v818 = vmul.f32 %v809, %v816
    %v819 = vld [vmem:[%s4 + $0x2] sm:$0x1]
    %v820 = vlaneseq
    %v821 = vshrl.u32 %v820, 7
    %v822 = vsub.s32 0, %v821
    %v823 = vrot.slane %v819, %v822
    %v824 = vmul.f32 %v818, %v823
    %825 = vst.msk [vmem:[#allocation2 + $0x10] sm:$0xff] %vm600, %v824
    // Predicated region
    $region22: #{tpu_custom_call.1} parent=1 // pred_check
      _
    $region23: #{tpu_custom_call.1} parent=1 // pred_check_branch
      %827 = sbr.rel (0) target = $region25
    $region24: #{tpu_custom_call.1} parent=1 // pred_region
      %s829 = ssub.s32 384, 384
      %830 = vsyncadd [#allocation3], %s829
      %s831 = sshll.u32 [#allocation2], 4
      %s832 = int_to_ptr.vmem [resolvable:$true] %s831
      %837 = dma.vmem_to_hbm [thread:$0]  %s832, 384, %s5, [#allocation3], 128, 128, 8
    $region25: #{tpu_custom_call.1} parent=1 // pred_fallthru
      _
    // Predicated region
    $region26: #{tpu_custom_call.1} parent=1 // pred_check
      _
    $region27: #{tpu_custom_call.1} parent=1 // pred_check_branch
      %839 = sbr.rel (0) target = $region29
    $region28: #{tpu_custom_call.1} parent=1 // pred_region
      %840 = dma.done [#allocation3], 384
    $region29: #{tpu_custom_call.1} parent=1 // pred_fallthru
      _
    %841 = vsyncpa [#allocation3], 1

</llo_original>
